<compile_context>
chip_gen: v6e
topology: v6e:2x2x1
jax: 0.10.0
libtpu: 0.0.40
codegen_flags: <defaults>
</compile_context>

<pallas_src>
import jax
import jax.numpy as jnp
from jax.experimental import pallas as pl
from jax.experimental.pallas import tpu as pltpu


# --------------------------------------------------------------------------- #
# Kernel                                                                      #
# --------------------------------------------------------------------------- #
def _make_head_kernel(Tq, mode):
    """mode in {"fused", "cached", "recompute"}.

    fused:     Tq == T, one MXU matmul projects q/k/v for the whole block.
    cached:    Tq <  T, k/v projected once per batch block into VMEM scratch
               at q_tile == 0 (q-tile axis must be sequential / "arbitrary").
    recompute: Tq <  T, k/v recomputed each step (q-tile axis may be
               "parallel"; used when the batch axis alone gives < 2 steps).
    """

    def kernel(x_ref, w_ref, o_ref, *scratch):
        Bt, T, C = x_ref.shape
        Hp = o_ref.shape[-1]                      # padded head width (x128)
        qt = pl.program_id(1)

        if mode == "fused":
            # One fused projection for q, k and v (scale already folded into
            # the q columns of the weight by the wrapper).
            x2d = x_ref[...].reshape(Bt * T, C)
            qkv = jnp.dot(x2d, w_ref[...],
                          preferred_element_type=jnp.float32)   # (Bt*T, 3*Hp)
            q = qkv[:, 0 * Hp:1 * Hp].reshape(Bt, T, Hp).astype(jnp.bfloat16)
            k = qkv[:, 1 * Hp:2 * Hp].reshape(Bt, T, Hp).astype(jnp.bfloat16)
            v = qkv[:, 2 * Hp:3 * Hp].reshape(Bt, T, Hp).astype(jnp.bfloat16)
        else:
            if mode == "cached":
                k_sc, v_sc = scratch

                @pl.when(qt == 0)
                def _():
                    x2d = x_ref[...].reshape(Bt * T, C)
                    kv = jnp.dot(x2d, w_ref[:, Hp:],
                                 preferred_element_type=jnp.float32)
                    k_sc[...] = kv[:, :Hp].reshape(Bt, T, Hp).astype(k_sc.dtype)
                    v_sc[...] = kv[:, Hp:].reshape(Bt, T, Hp).astype(v_sc.dtype)

                k = k_sc[...]
                v = v_sc[...]
            else:  # "recompute"
                x2d = x_ref[...].reshape(Bt * T, C)
                kv = jnp.dot(x2d, w_ref[:, Hp:],
                             preferred_element_type=jnp.float32)
                k = kv[:, :Hp].reshape(Bt, T, Hp).astype(jnp.bfloat16)
                v = kv[:, Hp:].reshape(Bt, T, Hp).astype(jnp.bfloat16)

            # Project only this step's query rows.
            row0 = pl.multiple_of(qt * Tq, Tq)
            xq = x_ref[:, pl.ds(row0, Tq), :].reshape(Bt * Tq, C)
            q = jnp.dot(xq, w_ref[:, :Hp],
                        preferred_element_type=jnp.float32)
            q = q.reshape(Bt, Tq, Hp).astype(jnp.bfloat16)

        # ---- attention scores (bf16 in, f32 accumulate) ----
        s = jnp.einsum("bqh,bkh->bqk", q, k,
                       preferred_element_type=jnp.float32)      # (Bt, Tq, T)

        # Causal mask for this query tile: global_row >= key_col.
        row = jax.lax.broadcasted_iota(jnp.int32, (Tq, 1), 0) + qt * Tq
        col = jax.lax.broadcasted_iota(jnp.int32, (1, T), 1)
        s = jnp.where(row >= col, s, -jnp.inf)

        # ---- row softmax, normalization applied after the PV matmul ----
        m = jnp.max(s, axis=-1, keepdims=True)
        p = jnp.exp(s - m)
        denom = jnp.sum(p, axis=-1, keepdims=True)

        out = jnp.einsum("bqk,bkh->bqh", p.astype(jnp.bfloat16), v,
                         preferred_element_type=jnp.float32)    # (Bt, Tq, Hp)
        out = out * pl.reciprocal(denom, approx=True)           # EUP slot
        o_ref[...] = out.astype(o_ref.dtype)

    return kernel


# --------------------------------------------------------------------------- #
# Tiling / VMEM sizing                                                        #
# --------------------------------------------------------------------------- #
def _vmem_capacity_bytes():
    """Per-core VMEM capacity; conservative fallback if the query fails."""
    try:
        info = pltpu.get_tpu_info()
        cap = getattr(info, "vmem_capacity_bytes", None)
        if cap:
            return int(cap)
    except Exception:
        pass
    return 64 << 20  # v7x per-TensorCore capacity (most restrictive)


def _step_vmem_bytes(Bt, Tq, T, C, Hp, out_itemsize):
    """Conservative per-grid-step VMEM estimate."""
    b16, b32 = 2, 4
    x_blk = 2 * Bt * T * C * b16                 # double-buffered bf16 input
    w_blk = 2 * C * 3 * Hp * b16                 # resident fused weight (2 bufs)
    o_blk = 2 * Bt * Tq * Hp * out_itemsize      # double-buffered output block
    kv_sc = 2 * Bt * T * Hp * b16                # k + v bf16 scratch
    proj = Bt * T * 3 * Hp * b32                 # worst-case projection result
    scores = 2 * Bt * Tq * T * b32               # s + p (f32)
    tail = Bt * Tq * Hp * (2 * b32 + b16)        # q, out, p(bf16) odds & ends
    return x_blk + w_blk + o_blk + kv_sc + proj + scores + tail


def _choose_tiles(B, T, C, Hp, out_itemsize, budget):
    """Largest (batch_block, q_block) fitting the VMEM budget, preferring >=2
    batch grid steps whenever B >= 2 (keeps both v7x TensorCores busy)."""
    bt_divs = sorted((d for d in range(1, B + 1) if B % d == 0), reverse=True)
    # q tiles: full T, else multiples of 16 dividing T (sublane-safe for bf16).
    tq_cands = [T] + sorted((d for d in range(16, T, 16) if T % d == 0),
                            reverse=True)

    for bt in bt_divs:
        if B >= 2 and B // bt < 2:
            continue                       # keep >=2 parallel batch steps
        for tq in tq_cands:
            if _step_vmem_bytes(bt, tq, T, C, Hp, out_itemsize) <= budget:
                return bt, tq
    # Nothing fits the conservative budget: smallest tiles, and let
    # vmem_limit_bytes absorb the overshoot (may spill at extreme T / C).
    return 1, tq_cands[-1]


# --------------------------------------------------------------------------- #
# Wrapper                                                                     #
# --------------------------------------------------------------------------- #
def fuse_qkv_weight(wq, wk, wv):
    """Build the fused, scale-folded, 128-lane-padded (C, 3*Hp) bf16 weight.

    Call ONCE at parameter init and reuse it on every forward (this is the
    hoisted launch-path work).  The softmax scale (n_embed ** -0.5, matching
    the module's C ** -0.5) is folded into the q columns in f32 before the
    bf16 cast so no precision is lost in the fold itself.
    """
    C, H = wq.shape
    assert wk.shape == (C, H) and wv.shape == (C, H)
    Hp = ((H + 127) // 128) * 128
    scale = float(C) ** -0.5
    pad = ((0, 0), (0, Hp - H))
    wq32 = jnp.pad(wq.astype(jnp.float32) * scale, pad)
    wk32 = jnp.pad(wk.astype(jnp.float32), pad)
    wv32 = jnp.pad(wv.astype(jnp.float32), pad)
    return jnp.concatenate([wq32, wk32, wv32], axis=1).astype(jnp.bfloat16)


def head_forward(x, w_qkv, head_size, *, return_padded=False):
    """x: (B, T, C) activations; w_qkv: fused (C, 3*Hp) bf16 weight from
    fuse_qkv_weight(); returns (B, T, head_size) in x.dtype."""
    B, T, C = x.shape
    assert w_qkv.shape[0] == C and w_qkv.shape[1] % (3 * 128) == 0
    Hp = w_qkv.shape[1] // 3
    assert head_size <= Hp

    out_dtype = x.dtype
    x_bf16 = x.astype(jnp.bfloat16)          # halve kernel input DMA bytes

    cap = _vmem_capacity_bytes()
    tile_budget = int(cap * 0.70)            # conservative sizing budget
    vmem_limit = int(min(cap * 0.85, 127 << 20))

    Bt, Tq = _choose_tiles(B, T, C, Hp, jnp.dtype(out_dtype).itemsize,
                           tile_budget)
    n_b, n_qt = B // Bt, T // Tq

    if n_qt == 1:
        mode = "fused"
    elif n_b >= 2:
        mode = "cached"          # batch axis feeds both cores; cache K/V
    else:
        mode = "recompute"       # B too small: parallelize over q tiles instead

    scratch_shapes = []
    if mode == "cached":
        scratch_shapes = [pltpu.VMEM((Bt, T, Hp), jnp.bfloat16),
                          pltpu.VMEM((Bt, T, Hp), jnp.bfloat16)]

    dim_sem = {
        "fused": ("parallel", "arbitrary"),
        "cached": ("parallel", "arbitrary"),
        "recompute": ("parallel", "parallel"),
    }[mode]

    out_padded = pl.pallas_call(
        _make_head_kernel(Tq, mode),
        out_shape=jax.ShapeDtypeStruct((B, T, Hp), out_dtype),
        grid_spec=pltpu.PrefetchScalarGridSpec(
            num_scalar_prefetch=0,
            grid=(n_b, n_qt),
            in_specs=[
                # Full-T batch block of activations (k/v need all rows).
                pl.BlockSpec((Bt, T, C), lambda b, qt: (b, 0, 0)),
                # Fused qkv weight, constant block index => stays resident.
                pl.BlockSpec((C, 3 * Hp), lambda b, qt: (0, 0)),
            ],
            out_specs=pl.BlockSpec((Bt, Tq, Hp), lambda b, qt: (b, qt, 0)),
            scratch_shapes=scratch_shapes,
        ),
        compiler_params=pltpu.CompilerParams(
            dimension_semantics=dim_sem,
            vmem_limit_bytes=vmem_limit,
        ),
    )(x_bf16, w_qkv)

    if return_padded:
        return out_padded
    # TODO(synk): fuse this narrow slice (H << Hp) into the consumer / fuse
    # multiple heads per kernel to avoid the extra padded HBM writeback pass.
    return out_padded[..., :head_size]


def head_reference(x, wq, wk, wv):
    """Pure-JAX f32 reference matching the PyTorch forward."""
    B, T, C = x.shape
    q = x @ wq
    k = x @ wk
    v = x @ wv
    wei = (q @ jnp.swapaxes(k, -2, -1)) * (C ** -0.5)
    tril = jnp.tril(jnp.ones((T, T), dtype=x.dtype))
    wei = jnp.where(tril == 0, -jnp.inf, wei)
    wei = jax.nn.softmax(wei, axis=-1)
    return wei @ v


if __name__ == "__main__":
    # Small shapes consistent with the module.
    B, T = 2, 8            # batch, sequence length (== block_size)
    n_embed = 32           # C
    head_size = 16         # H

    key = jax.random.PRNGKey(0)
    kx, kq, kk, kv = jax.random.split(key, 4)

    x = jax.random.normal(kx, (B, T, n_embed), dtype=jnp.float32)
    # Deterministic "Linear" weights, stored (C, H) so the kernel does x @ W.
    wq = jax.random.normal(kq, (n_embed, head_size), dtype=jnp.float32) * 0.02
    wk = jax.random.normal(kk, (n_embed, head_size), dtype=jnp.float32) * 0.02
    wv = jax.random.normal(kv, (n_embed, head_size), dtype=jnp.float32) * 0.02

    # Fused weight built once (hoisted off the per-forward path) and reused.
    w_qkv = fuse_qkv_weight(wq, wk, wv)

    out = jax.block_until_ready(head_forward(x, w_qkv, head_size))
    ref = head_reference(x, wq, wk, wv)

    assert out.shape == (B, T, head_size)
    # Tolerance covers bf16 MXU operands + the EUP approximate reciprocal;
    # accumulation is f32 throughout.
    max_err = float(jnp.max(jnp.abs(out - ref)))
    assert jnp.allclose(out, ref, atol=2e-2, rtol=2e-2), max_err

    print("KERNEL_OK")
</pallas_src>

<mosaic_0001>
module attributes {stable_mosaic.version = 11 : i64} {
  func.func @kernel(%arg0: i32, %arg1: i32, %arg2: memref<1x8x32xbf16, #tpu.memory_space<vmem>>, %arg3: memref<32x384xbf16, #tpu.memory_space<vmem>>, %arg4: memref<1x8x128xf32, #tpu.memory_space<vmem>>) attributes {dimension_semantics = [#tpu.dimension_semantics<parallel>, #tpu.dimension_semantics<arbitrary>], iteration_bounds = array<i64: 2, 1>, scalar_prefetch = 0 : i64, scratch_operands = 0 : i64, tpu.core_type = #tpu.core_type<tc>, window_params = [{transform_indices = @transform_0, window_bounds = array<i64: 1, 8, 32>}, {pipeline_mode = #tpu.pipeline_mode<synchronous>, transform_indices = @transform_1, window_bounds = array<i64: 32, 384>}, {transform_indices = @transform_2, window_bounds = array<i64: 1, 8, 128>}]} {
    %c0 = arith.constant 0 : index
    %c0_0 = arith.constant 0 : index
    %c0_1 = arith.constant 0 : index
    %0 = vector.load %arg2[%c0, %c0_0, %c0_1] : memref<1x8x32xbf16, #tpu.memory_space<vmem>>, vector<1x8x32xbf16>
    %1 = vector.shape_cast %0 : vector<1x8x32xbf16> to vector<8x32xbf16>
    %c0_2 = arith.constant 0 : index
    %c0_3 = arith.constant 0 : index
    %2 = vector.load %arg3[%c0_2, %c0_3] : memref<32x384xbf16, #tpu.memory_space<vmem>>, vector<32x384xbf16>
    %cst = arith.constant dense<0.000000e+00> : vector<8x384xf32>
    %3 = tpu.matmul %1, %2, %cst {dimension_numbers = #tpu.dot_dimension_numbers<[1], [0], [0], [1], [0, 0, 1, 1], [], []>} : vector<8x32xbf16>, vector<32x384xbf16>, vector<8x384xf32> -> vector<8x384xf32>
    %4 = vector.extract_strided_slice %3 {offsets = [0, 0], sizes = [8, 128], strides = [1, 1]} : vector<8x384xf32> to vector<8x128xf32>
    %5 = vector.shape_cast %4 : vector<8x128xf32> to vector<1x8x128xf32>
    %6 = arith.truncf %5 : vector<1x8x128xf32> to vector<1x8x128xbf16>
    %7 = vector.extract_strided_slice %3 {offsets = [0, 128], sizes = [8, 128], strides = [1, 1]} : vector<8x384xf32> to vector<8x128xf32>
    %8 = vector.shape_cast %7 : vector<8x128xf32> to vector<1x8x128xf32>
    %9 = arith.truncf %8 : vector<1x8x128xf32> to vector<1x8x128xbf16>
    %10 = vector.extract_strided_slice %3 {offsets = [0, 256], sizes = [8, 128], strides = [1, 1]} : vector<8x384xf32> to vector<8x128xf32>
    %11 = vector.shape_cast %10 : vector<8x128xf32> to vector<1x8x128xf32>
    %12 = arith.truncf %11 : vector<1x8x128xf32> to vector<1x8x128xbf16>
    "tpu.trace_start"() <{level = 10 : i32, message = "bqh,bkh->bqk"}> : () -> ()
    %cst_4 = arith.constant dense<0.000000e+00> : vector<1x8x8xf32>
    %13 = tpu.matmul %6, %9, %cst_4 {dimension_numbers = #tpu.dot_dimension_numbers<[2], [2], [1], [1], [0, 0, 0, 1, 1, 1], [0], [0]>} : vector<1x8x128xbf16>, vector<1x8x128xbf16>, vector<1x8x8xf32> -> vector<1x8x8xf32>
    "tpu.trace_stop"() : () -> ()
    %14 = tpu.iota {dimensions = array<i32: 0>} : vector<8x1xi32>
    %c8_i32 = arith.constant 8 : i32
    %15 = arith.muli %arg1, %c8_i32 : i32
    %16 = vector.broadcast %15 : i32 to vector<8x1xi32>
    %17 = arith.addi %14, %16 : vector<8x1xi32>
    %18 = tpu.iota {dimensions = array<i32: 1>} : vector<1x8xi32>
    %19 = vector.broadcast %17 : vector<8x1xi32> to vector<8x8xi32>
    %20 = vector.broadcast %18 : vector<1x8xi32> to vector<8x8xi32>
    %21 = arith.cmpi sge, %19, %20 : vector<8x8xi32>
    %cst_5 = arith.constant 0xFF800000 : f32
    %22 = vector.shape_cast %21 : vector<8x8xi1> to vector<1x8x8xi1>
    %23 = vector.broadcast %cst_5 : f32 to vector<1x8x8xf32>
    %24 = arith.select %22, %13, %23 : vector<1x8x8xi1>, vector<1x8x8xf32>
    %cst_6 = arith.constant dense<0xFF800000> : vector<1x8xf32>
    %25 = vector.multi_reduction <maximumf>, %24, %cst_6 [2] : vector<1x8x8xf32> to vector<1x8xf32>
    %26 = vector.shape_cast %25 : vector<1x8xf32> to vector<1x8x1xf32>
    %27 = vector.broadcast %26 : vector<1x8x1xf32> to vector<1x8x8xf32>
    %28 = arith.subf %24, %27 : vector<1x8x8xf32>
    %29 = math.exp %28 : vector<1x8x8xf32>
    %cst_7 = arith.constant dense<0.000000e+00> : vector<1x8xf32>
    %30 = vector.multi_reduction <add>, %29, %cst_7 [2] : vector<1x8x8xf32> to vector<1x8xf32>
    %31 = vector.shape_cast %30 : vector<1x8xf32> to vector<1x8x1xf32>
    %32 = arith.truncf %29 : vector<1x8x8xf32> to vector<1x8x8xbf16>
    "tpu.trace_start"() <{level = 10 : i32, message = "bqk,bkh->bqh"}> : () -> ()
    %cst_8 = arith.constant dense<0.000000e+00> : vector<1x8x128xf32>
    %33 = tpu.matmul %32, %12, %cst_8 {dimension_numbers = #tpu.dot_dimension_numbers<[2], [1], [1], [2], [0, 0, 0, 1, 1, 2], [0], [0]>} : vector<1x8x8xbf16>, vector<1x8x128xbf16>, vector<1x8x128xf32> -> vector<1x8x128xf32>
    "tpu.trace_stop"() : () -> ()
    %34 = tpu.reciprocal %31 {approx = true} : vector<1x8x1xf32> -> vector<1x8x1xf32>
    %35 = vector.broadcast %34 : vector<1x8x1xf32> to vector<1x8x128xf32>
    %36 = arith.mulf %33, %35 : vector<1x8x128xf32>
    %c0_9 = arith.constant 0 : index
    %c0_10 = arith.constant 0 : index
    %c0_11 = arith.constant 0 : index
    %37 = vector.load %arg4[%c0_9, %c0_10, %c0_11] : memref<1x8x128xf32, #tpu.memory_space<vmem>>, vector<1x8x128xf32>
    tpu.vector_store %arg4[%c0_9, %c0_10, %c0_11], %36 {strides = array<i32>} : memref<1x8x128xf32, #tpu.memory_space<vmem>>, vector<1x8x128xf32>,
    return
  }
  func.func @transform_0(%arg0: i32, %arg1: i32) -> (i32, i32, i32) {
    %c0_i32 = arith.constant 0 : i32
    %c0_i32_0 = arith.constant 0 : i32
    %c0_i32_1 = arith.constant 0 : i32
    return %arg0, %c0_i32, %c0_i32_0 : i32, i32, i32
  }
  func.func @transform_1(%arg0: i32, %arg1: i32) -> (i32, i32) {
    %c0_i32 = arith.constant 0 : i32
    %c0_i32_0 = arith.constant 0 : i32
    %c0_i32_1 = arith.constant 0 : i32
    return %c0_i32, %c0_i32_0 : i32, i32
  }
  func.func @transform_2(%arg0: i32, %arg1: i32) -> (i32, i32, i32) {
    %c0_i32 = arith.constant 0 : i32
    %c0_i32_0 = arith.constant 0 : i32
    return %arg0, %arg1, %c0_i32 : i32, i32, i32
  }
}

</mosaic_0001>

<llo_original>
// kernel: tpu_custom_call.1
$region0: #{tpu_custom_call.1}
  #allocation0 [shape = 'u32[]', space=smem, size = 0x4, offset = 0x4, fixed_abs, tag = 'smem constant byte address 0x4 - core index']
  #allocation1 [shape = 'u32[144,128]{1,0:T(1,128)}', space=vmem, size = 0x12000, scoped, tag = 'internal scratch']
  %s0 = inlined_call_operand.hbm [shape: bf16[2,8,32], index: 0, kind: input, shape index: {}]
  %s1 = inlined_call_operand.hbm [shape: bf16[32,384], index: 1, kind: input, shape index: {}]
  %s2 = inlined_call_operand.hbm [shape: f32[2,8,128], index: 2, kind: output, shape index: {}]
  %s3 = sld [smem:[#allocation0]]
  $region49: #{tpu_custom_call.1} parent=0
    _
  %s5 = ssub.s32 1, %s3
  %s6 = scalar_select 0, %s5, %s3
  $region1: #{tpu_custom_call.1} parent=0
    #allocation2 [shape = 'u8[4096]{0}', space=vmem, size = 0x1000, scoped, tag = 'input window, operand 0']
    #allocation3 [shape = 's32[2]{0}', space=sflag, size = 0x8, scoped, tag = 'scoped memory for tpu_custom_call.1']
    #allocation4 [shape = 's32[2]{0}', space=sflag, size = 0x8, scoped, tag = 'scoped memory for tpu_custom_call.1']
    #allocation5 [shape = 'u8[24576]{0}', space=vmem, size = 0x6000, scoped, tag = 'input window, operand 1, single buffered']
    #allocation6 [shape = 's32[1]{0}', space=sflag, size = 0x4, scoped, tag = 'scoped memory for tpu_custom_call.1']
    #allocation7 [shape = 'u8[8192]{0}', space=vmem, size = 0x2000, scoped, tag = 'output window, operand 0']
    %7 = vsyncpa [#allocation3], 0
    %s8 = scalar_lea.sflag [#allocation3], 1
    %9 = vsyncpa %s8, 0
    %10 = vsyncpa [#allocation6], 0
    %11 = vsyncpa [#allocation4], 0
    %s12 = scalar_lea.sflag [#allocation4], 1
    %13 = vsyncpa %s12, 0
    loop: start=0, step=1, limit=4
    $region2: #{tpu_custom_call.1} parent=1 // loop_pre_header
      _
    $region3: #{tpu_custom_call.1} parent=1 // loop_header
      %s15 = sphi 0, %s19
      %p16 = scmp.ge.s32.totalorder %s15, 4
      %s22 = sphi 0, %s34
      %s23 = sphi 0, %s30
      %s24 = sphi 0, %s22
      %s25 = sphi 0, %s23
      %s26 = sphi 0, %s24
      %s27 = sphi 0, %s25
      %s37 = sphi 0, %s39
      %s40 = sphi 0, %s37
      %s41 = sphi 0, %s40
      %s57 = sphi 0, %s41
      %s61 = sphi 0, %s61
      %s63 = sphi 0, %s61
      %s64 = sphi 0, %s63
      %s78 = sphi 0, %s64
      %s86 = sphi 0, %s88
      %s89 = sphi 0, %s86
      %s90 = sphi 0, %s89
      %s106 = sphi 0, %s90
    $region4: #{tpu_custom_call.1} parent=1 // loop_header_branch
      %18 = sbr.rel (%p16) target = $region8
    $region5: #{tpu_custom_call.1} parent=1 // loop_body
      %s20 = ssub.s32 %s15, 1
      %s21 = ssub.s32 %s15, 2
      %s28 = sadd.s32 1, %s23
      %p29 = scmp.ge.s32.totalorder %s28, 1
      %s30 = scalar_select %p29, 0, %s28
      %s31 = sadd.s32 1, %s22
      %s32 = scalar_select %p29, %s31, %s22
      %p33 = scmp.ge.s32.totalorder %s32, 2
      %s34 = scalar_select %p33, 0, %s32
      %s35 = ssub.s32 %s22, %s34
      %p36 = scmp.eq.s32.totalorder %s35, 0
      %s38 = sadd.s32 %s37, 1
      %s39 = scalar_select %p36, %s37, %s38
      %p42 = pneg %p36
      %p43 = scmp.eq.s32.totalorder %s15, 1
      %p44 = por %p42, %p43
      %p45 = scmp.ne.s32.totalorder %s37, %s40
      %p46 = scmp.eq.s32.totalorder %s15, 0
      %p47 = por %p45, %p46
      %p48 = scmp.ne.s32.totalorder %s37, %s40
      %p49 = scmp.eq.s32.totalorder %s20, 1
      %p50 = por %p48, %p49
      %p51 = scmp.ne.s32.totalorder %s40, %s41
      %p52 = scmp.eq.s32.totalorder %s20, 0
      %p53 = por %p51, %p52
      %p54 = scmp.ne.s32.totalorder %s40, %s41
      %p55 = scmp.eq.s32.totalorder %s21, 1
      %p56 = por %p54, %p55
      %p58 = scmp.ne.s32.totalorder %s41, %s57
      %p59 = scmp.eq.s32.totalorder %s21, 0
      %p60 = por %p58, %p59
      %s62 = sadd.s32 %s61, 1
      %p65 = scmp.eq.s32.totalorder %s15, 1
      %p66 = scmp.ne.s32.totalorder %s61, %s63
      %p67 = scmp.eq.s32.totalorder %s15, 0
      %p68 = por %p66, %p67
      %p69 = scmp.ne.s32.totalorder %s61, %s63
      %p70 = scmp.eq.s32.totalorder %s20, 1
      %p71 = por %p69, %p70
      %p72 = scmp.ne.s32.totalorder %s63, %s64
      %p73 = scmp.eq.s32.totalorder %s20, 0
      %p74 = por %p72, %p73
      %p75 = scmp.ne.s32.totalorder %s63, %s64
      %p76 = scmp.eq.s32.totalorder %s21, 1
      %p77 = por %p75, %p76
      %p79 = scmp.ne.s32.totalorder %s64, %s78
      %p80 = scmp.eq.s32.totalorder %s21, 0
      %p81 = por %p79, %p80
      %s82 = ssub.s32 %s22, %s34
      %s83 = ssub.s32 %s23, %s30
      %s84 = sor.u32 %s82, %s83
      %p85 = scmp.eq.s32.totalorder %s84, 0
      %s87 = sadd.s32 %s86, 1
      %s88 = scalar_select %p85, %s86, %s87
      %p91 = pneg %p85
      %p92 = scmp.eq.s32.totalorder %s15, 1
      %p93 = por %p91, %p92
      %p94 = scmp.ne.s32.totalorder %s86, %s89
      %p95 = scmp.eq.s32.totalorder %s15, 0
      %p96 = por %p94, %p95
      %p97 = scmp.ne.s32.totalorder %s86, %s89
      %p98 = scmp.eq.s32.totalorder %s20, 1
      %p99 = por %p97, %p98
      %p100 = scmp.ne.s32.totalorder %s89, %s90
      %p101 = scmp.eq.s32.totalorder %s20, 0
      %p102 = por %p100, %p101
      %p103 = scmp.ne.s32.totalorder %s89, %s90
      %p104 = scmp.eq.s32.totalorder %s21, 1
      %p105 = por %p103, %p104
      %p107 = scmp.ne.s32.totalorder %s90, %s106
      %p108 = scmp.eq.s32.totalorder %s21, 0
      %p109 = por %p107, %p108
      %p110 = scmp.le.s32.totalorder 1, %s15
      %p111 = scmp.lt.s32.totalorder %s15, 3
      %p112 = pnand %p110, %p111
      %p113 = pneg %p112
      // Predicated region
      $region9: #{tpu_custom_call.1} parent=5 // pred_check
        _
      $region10: #{tpu_custom_call.1} parent=5 // pred_check_branch
        %115 = sbr.rel (%p112) target = $region12
      $region11: #{tpu_custom_call.1} parent=5 // pred_region
        %s116 = ssub.s32 %s15, 1
        // Predicated region
        $region13: #{tpu_custom_call.1} parent=11 // pred_check
          %p117 = pneg %p74
        $region14: #{tpu_custom_call.1} parent=11 // pred_check_branch
          %119 = sbr.rel (%p117) target = $region16
        $region15: #{tpu_custom_call.1} parent=11 // pred_region
          %s121 = ssub.s32 768, 768
          %122 = vsyncadd [#allocation6], %s121
          %s123 = sshll.u32 [#allocation5], 4
          %s124 = int_to_ptr.vmem [resolvable:$true] %s123
          %129 = dma.hbm_to_vmem [thread:$0]  %s1, 768, %s124, [#allocation6], 192, 192, 12
        $region16: #{tpu_custom_call.1} parent=11 // pred_fallthru
          _
      $region12: #{tpu_custom_call.1} parent=5 // pred_fallthru
        _
      %p130 = scmp.lt.s32.totalorder %s15, 2
      // Predicated region
      $region17: #{tpu_custom_call.1} parent=5 // pred_check
        %p131 = pneg %p130
      $region18: #{tpu_custom_call.1} parent=5 // pred_check_branch
        %133 = sbr.rel (%p131) target = $region20
      $region19: #{tpu_custom_call.1} parent=5 // pred_region
        // Predicated region
        $region21: #{tpu_custom_call.1} parent=19 // pred_check
          %p134 = pneg %p47
        $region22: #{tpu_custom_call.1} parent=19 // pred_check_branch
          %136 = sbr.rel (%p134) target = $region24
        $region23: #{tpu_custom_call.1} parent=19 // pred_region
          %s137 = sand.u32 %s37, 1
          %s138 = scalar_lea.sflag [#allocation3], %s137
          %s139 = sand.u32 %s37, 1
          %s140 = smul.addr %s139, 4
          %s141 = scalar_lea.vmem [#allocation2], %s140
          %s143 = ssub.s32 64, 64
          %144 = vsyncadd %s138, %s143
          %s145 = smul.addr %s22, 64
          %s146 = scalar_lea.hbm %s0, %s145
          %s148 = sshll.u32 %s141, 4
          %s149 = int_to_ptr.vmem [resolvable:$true] %s148
          %151 = dma.hbm_to_vmem [thread:$0]  %s146, 64, %s149, %s138
        $region24: #{tpu_custom_call.1} parent=19 // pred_fallthru
          _
      $region20: #{tpu_custom_call.1} parent=5 // pred_fallthru
        _
      %p152 = scmp.le.s32.totalorder 1, %s15
      %p153 = scmp.lt.s32.totalorder %s15, 3
      %p154 = pnand %p152, %p153
      %p155 = pneg %p154
      // Predicated region
      $region25: #{tpu_custom_call.1} parent=5 // pred_check
        _
      $region26: #{tpu_custom_call.1} parent=5 // pred_check_branch
        %157 = sbr.rel (%p154) target = $region28
      $region27: #{tpu_custom_call.1} parent=5 // pred_region
        %s158 = ssub.s32 %s15, 1
        %s159 = sand.u32 %s40, 1
        %s160 = scalar_lea.sflag [#allocation3], %s159
        %s161 = sand.u32 %s40, 1
        %s162 = smul.addr %s161, 4
        %s163 = scalar_lea.vmem [#allocation2], %s162
        // Predicated region
        $region29: #{tpu_custom_call.1} parent=27 // pred_check
          %p164 = pneg %p53
        $region30: #{tpu_custom_call.1} parent=27 // pred_check_branch
          %166 = sbr.rel (%p164) target = $region32
        $region31: #{tpu_custom_call.1} parent=27 // pred_region
          %167 = dma.done %s160, 64
        $region32: #{tpu_custom_call.1} parent=27 // pred_fallthru
          _
        // Predicated region
        $region33: #{tpu_custom_call.1} parent=27 // pred_check
          %p168 = pneg %p74
        $region34: #{tpu_custom_call.1} parent=27 // pred_check_branch
          %170 = sbr.rel (%p168) target = $region36
        $region35: #{tpu_custom_call.1} parent=27 // pred_region
          %171 = dma.done [#allocation6], 768
        $region36: #{tpu_custom_call.1} parent=27 // pred_fallthru
          _
        %s172 = sand.u32 %s40, 1
        %s173 = scalar_lea.sflag [#allocation3], %s172
        %s174 = sand.u32 %s40, 1
        %s175 = smul.addr %s174, 4
        %s176 = scalar_lea.vmem [#allocation2], %s175
        %p177 = pneg %p53
        %p178 = pneg %p50
        %p179 = pneg %p74
        %p180 = pneg %p71
        %p181 = pneg %p102
        %p182 = pneg %p99
        %s183 = sand.u32 %s89, 1
        %s184 = scalar_lea.sflag [#allocation4], %s183
        %s185 = sand.u32 %s89, 1
        %s186 = smul.addr %s185, 8
        %s187 = scalar_lea.vmem [#allocation7], %s186
        %v189 = vld [vmem:[%s163] sm:$0xf]
        %v190 = vld [vmem:[#allocation5] sm:$0xff]
        %v191 = vld [vmem:[#allocation5 + $0x8] sm:$0xf]
        %v192 = vld [vmem:[#allocation5 + $0xc] sm:$0xff]
        %v193 = vld [vmem:[#allocation5 + $0x14] sm:$0xf]
        %v194 = vld [vmem:[#allocation5 + $0x18] sm:$0xff]
        %v195 = vld [vmem:[#allocation5 + $0x20] sm:$0xf]
        %v196 = vld [vmem:[#allocation5 + $0x24] sm:$0xff]
        %v197 = vld [vmem:[#allocation5 + $0x2c] sm:$0xf]
        %v206 = vunpack.c.l.b16 %v190
        %v207 = vunpack.c.h.b16 %v190
        %v208 = vunpack.c.l.b16 %v191
        %v209 = vunpack.c.l.b16 %v192
        %v210 = vunpack.c.h.b16 %v192
        %v211 = vunpack.c.l.b16 %v193
        %v212 = vunpack.c.l.b16 %v194
        %v213 = vunpack.c.h.b16 %v194
        %v214 = vunpack.c.l.b16 %v195
        %v215 = vunpack.c.l.b16 %v196
        %v216 = vunpack.c.h.b16 %v196
        %v217 = vunpack.c.l.b16 %v197
        %v218 = vpack.c.b16 %v209, %v206
        %v219 = vpack.c.b16 %v210, %v207
        %v220 = vpack.c.b16 %v211, %v208
        %v221 = vpack.c.b16 %v215, %v212
        %v222 = vpack.c.b16 %v216, %v213
        %v223 = vpack.c.b16 %v217, %v214
        %vm230 = vcmask 261120
        %v232 = vsel %vm230, %v189, 0
        %234 = vmatprep.subr.bf16.mxu0 0
        %235 = vmatpush1.bf16.msra.mxu0 0
        %236 = vmatprep.subr.bf16.mxu0 0
        %237 = vmatpush1.bf16.msra.mxu0 0
        %238 = vmatprep.subr.bf16.mxu0 0
        %239 = vmatpush1.bf16.msra.mxu0 0
        %240 = vmatprep.subr.bf16.mxu0 0
        %241 = vmatpush1.bf16.msra.mxu0 0
        %242 = vmatprep.subr.bf16.mxu0 0
        %243 = vmatpush1.bf16.msra.mxu0 0
        %244 = vmatprep.subr.bf16.mxu0 0
        %245 = vmatpush1.bf16.msra.mxu0 0
        %246 = vmatprep.subr.bf16.mxu0 %v222
        %247 = vmatpush1.bf16.msra.mxu0 %v221
        %248 = vmatprep.subr.bf16.mxu0 %v219
        %249 = vmatpush1.bf16.msra.mxu0 %v218
        %250 = vmatprep.subr.bf16.mxu0 0
        %251 = vmatpush2.bf16.msra.mxu0 0
        %252 = vmatprep.subr.bf16.mxu0 0
        %253 = vmatpush2.bf16.msra.mxu0 0
        %254 = vmatprep.subr.bf16.mxu0 0
        %255 = vmatpush2.bf16.msra.mxu0 0
        %256 = vmatprep.subr.bf16.mxu0 0
        %257 = vmatpush2.bf16.msra.mxu0 0
        %258 = vmatprep.subr.bf16.mxu0 0
        %259 = vmatpush2.bf16.msra.mxu0 0
        %260 = vmatprep.subr.bf16.mxu0 0
        %261 = vmatpush2.bf16.msra.mxu0 0
        %262 = vmatprep.subr.bf16.mxu0 0
        %263 = vmatpush2.bf16.msra.mxu0 0
        %264 = vmatprep.subr.bf16.mxu0 0
        %265 = vmatpush2.bf16.msra.mxu0 0
        %266 = vmatprep.mubr.bf16.mxu0 0
        %267 = vmatmul.mubr.bf16.gmra.mxu0 %v232
        %v268 = vpop.f32.mrf.mxu0
        %v269 = vadd.f32 0.0, %v268
        %v270 = vpop.f32.mrf.mxu0
        %v271 = vadd.f32 0.0, %v270
        %v272 = vpop.f32.mrf.mxu0
        %v273 = vpop.f32.mrf.mxu0
        %274 = vdwg.mxu0
        %275 = vmatprep.subr.bf16.mxu0 0
        %276 = vmatpush1.bf16.msra.mxu0 0
        %277 = vmatprep.subr.bf16.mxu0 0
        %278 = vmatpush1.bf16.msra.mxu0 0
        %279 = vmatprep.subr.bf16.mxu0 0
        %280 = vmatpush1.bf16.msra.mxu0 0
        %281 = vmatprep.subr.bf16.mxu0 0
        %282 = vmatpush1.bf16.msra.mxu0 0
        %283 = vmatprep.subr.bf16.mxu0 0
        %284 = vmatpush1.bf16.msra.mxu0 0
        %285 = vmatprep.subr.bf16.mxu0 0
        %286 = vmatpush1.bf16.msra.mxu0 0
        %287 = vmatprep.subr.bf16.mxu0 0
        %288 = vmatpush1.bf16.msra.mxu0 %v223
        %289 = vmatprep.subr.bf16.mxu0 0
        %290 = vmatpush1.bf16.msra.mxu0 %v220
        %291 = vmatprep.subr.bf16.mxu0 0
        %292 = vmatpush2.bf16.msra.mxu0 0
        %293 = vmatprep.subr.bf16.mxu0 0
        %294 = vmatpush2.bf16.msra.mxu0 0
        %295 = vmatprep.subr.bf16.mxu0 0
        %296 = vmatpush2.bf16.msra.mxu0 0
        %297 = vmatprep.subr.bf16.mxu0 0
        %298 = vmatpush2.bf16.msra.mxu0 0
        %299 = vmatprep.subr.bf16.mxu0 0
        %300 = vmatpush2.bf16.msra.mxu0 0
        %301 = vmatprep.subr.bf16.mxu0 0
        %302 = vmatpush2.bf16.msra.mxu0 0
        %303 = vmatprep.subr.bf16.mxu0 0
        %304 = vmatpush2.bf16.msra.mxu0 0
        %305 = vmatprep.subr.bf16.mxu0 0
        %306 = vmatpush2.bf16.msra.mxu0 0
        %307 = vmatprep.mubr.bf16.mxu0 0
        %308 = vmatmul.mubr.bf16.gmra.mxu0 %v232
        %v309 = vpop.f32.mrf.mxu0
        %v310 = vadd.f32 0.0, %v309
        %v311 = vpop.f32.mrf.mxu0
        %v312 = vpop.f32.mrf.mxu0
        %v313 = vpop.f32.mrf.mxu0
        %314 = vdwg.mxu0
        %v315 = vpack.c.bf16 %v269, %v269
        %v316 = vpack.c.bf16 %v271, %v271
        %v317 = vpack.c.bf16 %v310, %v310
        %318 = vmatprep.subr.bf16.mxu0 0
        %319 = vmatpush1.bf16.xpose.msra.mxu0 0
        %320 = vmatprep.subr.bf16.mxu0 0
        %321 = vmatpush1.bf16.xpose.msra.mxu0 0
        %322 = vmatprep.subr.bf16.mxu0 0
        %323 = vmatpush1.bf16.xpose.msra.mxu0 0
        %324 = vmatprep.subr.bf16.mxu0 0
        %325 = vmatpush1.bf16.xpose.msra.mxu0 0
        %326 = vmatprep.subr.bf16.mxu0 0
        %327 = vmatpush1.bf16.xpose.msra.mxu0 0
        %328 = vmatprep.subr.bf16.mxu0 0
        %329 = vmatpush1.bf16.xpose.msra.mxu0 0
        %330 = vmatprep.subr.bf16.mxu0 0
        %331 = vmatpush1.bf16.xpose.msra.mxu0 0
        %332 = vmatprep.subr.bf16.mxu0 0
        %333 = vmatpush1.bf16.xpose.msra.mxu0 %v316
        %334 = vmatprep.subr.bf16.mxu0 0
        %335 = vmatpush2.bf16.xpose.msra.mxu0 0
        %336 = vmatprep.subr.bf16.mxu0 0
        %337 = vmatpush2.bf16.xpose.msra.mxu0 0
        %338 = vmatprep.subr.bf16.mxu0 0
        %339 = vmatpush2.bf16.xpose.msra.mxu0 0
        %340 = vmatprep.subr.bf16.mxu0 0
        %341 = vmatpush2.bf16.xpose.msra.mxu0 0
        %342 = vmatprep.subr.bf16.mxu0 0
        %343 = vmatpush2.bf16.xpose.msra.mxu0 0
        %344 = vmatprep.subr.bf16.mxu0 0
        %345 = vmatpush2.bf16.xpose.msra.mxu0 0
        %346 = vmatprep.subr.bf16.mxu0 0
        %347 = vmatpush2.bf16.xpose.msra.mxu0 0
        %348 = vmatprep.subr.bf16.mxu0 0
        %349 = vmatpush2.bf16.xpose.msra.mxu0 0
        %350 = vmatprep.mubr.bf16.mxu0 0
        %351 = vmatmul.mubr.bf16.gmra.mxu0 %v315
        %v352 = vpop.f32.mrf.mxu0
        %v353 = vadd.f32 0.0, %v352
        %v354 = vpop.f32.mrf.mxu0
        %v355 = vpop.f32.mrf.mxu0
        %v356 = vpop.f32.mrf.mxu0
        %357 = vdwg.mxu0
        %v358 = vlaneseq
        %v359 = vshrl.u32 %v358, 7
        %s360 = smul.u32 %s25, 8
        %v361 = vstv %s360
        %v362 = vadd.s32 %v359, %v361
        %v363 = vlaneseq
        %v364 = vand.u32 %v363, 127
        %vm365 = vcmp.ge.s32.totalorder %v362, %v364
        %v366 = vsel %vm365, %v353, -inf
        %vm367 = vcmask 64512
        %v368 = vsel %vm367, %v366, -inf
        %369 = vmax.xlane.f32.xlu0 %v368
        %v370 = vpop.xlane.xlu0 %369
        %v371 = vsub.f32 %v366, %v370
        %v372 = vmul.f32 %v371, 1.442695
        %v373 = vpow.pop %v372
        %v374 = vsel %vm367, %v373, 0.0
        %375 = vadd.xlane.f32.xlu0 %v374
        %v376 = vpop.xlane.xlu0 %375
        %v377 = vpack.c.bf16 %v373, %v373
        %v379 = vsel %vm367, %v377, 0
        %vm381 = vcmask 1043456
        %v383 = vsel %vm381, %v317, 0
        %385 = vmatprep.subr.bf16.mxu0 0
        %386 = vmatpush1.bf16.msra.mxu0 0
        %387 = vmatprep.subr.bf16.mxu0 0
        %388 = vmatpush1.bf16.msra.mxu0 0
        %389 = vmatprep.subr.bf16.mxu0 0
        %390 = vmatpush1.bf16.msra.mxu0 0
        %391 = vmatprep.subr.bf16.mxu0 0
        %392 = vmatpush1.bf16.msra.mxu0 0
        %393 = vmatprep.subr.bf16.mxu0 0
        %394 = vmatpush1.bf16.msra.mxu0 0
        %395 = vmatprep.subr.bf16.mxu0 0
        %396 = vmatpush1.bf16.msra.mxu0 0
        %397 = vmatprep.subr.bf16.mxu0 0
        %398 = vmatpush1.bf16.msra.mxu0 0
        %399 = vmatprep.subr.bf16.mxu0 0
        %400 = vmatpush1.bf16.msra.mxu0 %v383
        %401 = vmatprep.subr.bf16.mxu0 0
        %402 = vmatpush2.bf16.msra.mxu0 0
        %403 = vmatprep.subr.bf16.mxu0 0
        %404 = vmatpush2.bf16.msra.mxu0 0
        %405 = vmatprep.subr.bf16.mxu0 0
        %406 = vmatpush2.bf16.msra.mxu0 0
        %407 = vmatprep.subr.bf16.mxu0 0
        %408 = vmatpush2.bf16.msra.mxu0 0
        %409 = vmatprep.subr.bf16.mxu0 0
        %410 = vmatpush2.bf16.msra.mxu0 0
        %411 = vmatprep.subr.bf16.mxu0 0
        %412 = vmatpush2.bf16.msra.mxu0 0
        %413 = vmatprep.subr.bf16.mxu0 0
        %414 = vmatpush2.bf16.msra.mxu0 0
        %415 = vmatprep.subr.bf16.mxu0 0
        %416 = vmatpush2.bf16.msra.mxu0 0
        %417 = vmatprep.mubr.bf16.mxu0 0
        %418 = vmatmul.mubr.bf16.gmra.mxu0 %v379
        %v419 = vpop.f32.mrf.mxu0
        %v420 = vadd.f32 0.0, %v419
        %v421 = vpop.f32.mrf.mxu0
        %v422 = vpop.f32.mrf.mxu0
        %v423 = vpop.f32.mrf.mxu0
        %424 = vdwg.mxu0
        %v425 = vrcp.pop %v376
        %v426 = vmul.f32 %v420, %v425
        %427 = vst [vmem:[%s187] sm:$0xff] %v426
        %s428 = sand.u32 %s89, 1
        %s429 = scalar_lea.sflag [#allocation4], %s428
        %s430 = sand.u32 %s89, 1
        %s431 = smul.addr %s430, 8
        %s432 = scalar_lea.vmem [#allocation7], %s431
        // Predicated region
        $region37: #{tpu_custom_call.1} parent=27 // pred_check
          %p433 = pneg %p99
        $region38: #{tpu_custom_call.1} parent=27 // pred_check_branch
          %435 = sbr.rel (%p433) target = $region40
        $region39: #{tpu_custom_call.1} parent=27 // pred_region
          %s437 = ssub.s32 128, 128
          %438 = vsyncadd %s429, %s437
          %s439 = sadd.s32 %s25, %s24
          %s440 = smul.addr %s439, 128
          %s441 = scalar_lea.hbm %s2, %s440
          %s443 = sshll.u32 %s432, 4
          %s444 = int_to_ptr.vmem [resolvable:$true] %s443
          %446 = dma.vmem_to_hbm [thread:$0]  %s444, 128, %s441, %s429
        $region40: #{tpu_custom_call.1} parent=27 // pred_fallthru
          _
      $region28: #{tpu_custom_call.1} parent=5 // pred_fallthru
        _
      %p447 = scmp.le.s32.totalorder 2, %s15
      // Predicated region
      $region41: #{tpu_custom_call.1} parent=5 // pred_check
        %p448 = pneg %p447
      $region42: #{tpu_custom_call.1} parent=5 // pred_check_branch
        %450 = sbr.rel (%p448) target = $region44
      $region43: #{tpu_custom_call.1} parent=5 // pred_region
        %s451 = ssub.s32 %s15, 2
        // Predicated region
        $region45: #{tpu_custom_call.1} parent=43 // pred_check
          %p452 = pneg %p105
        $region46: #{tpu_custom_call.1} parent=43 // pred_check_branch
          %454 = sbr.rel (%p452) target = $region48
        $region47: #{tpu_custom_call.1} parent=43 // pred_region
          %s455 = sand.u32 %s90, 1
          %s456 = scalar_lea.sflag [#allocation4], %s455
          %s457 = sand.u32 %s90, 1
          %s458 = smul.addr %s457, 8
          %s459 = scalar_lea.vmem [#allocation7], %s458
          %460 = dma.done %s456, 128
        $region48: #{tpu_custom_call.1} parent=43 // pred_fallthru
          _
      $region44: #{tpu_custom_call.1} parent=5 // pred_fallthru
        _
    $region6: #{tpu_custom_call.1} parent=1 // loop_footer
      %s19 = sadd.s32 1, %s15
    $region7: #{tpu_custom_call.1} parent=1 // loop_footer_branch
      %14 = sbr.rel target = $region3
    $region8: #{tpu_custom_call.1} parent=1 // loop_exit
      _
    %461 = vsyncpa [#allocation3], 1
    %s462 = scalar_lea.sflag [#allocation3], 1
    %463 = vsyncpa %s462, 1
    %464 = vsyncpa [#allocation6], 1
    %465 = vsyncpa [#allocation4], 1
    %s466 = scalar_lea.sflag [#allocation4], 1
    %467 = vsyncpa %s466, 1

</llo_original>
